<compile_context>
chip_gen: v7x
topology: tpu7x:2x2x1
jax: 0.10.0
libtpu: 0.0.40
codegen_flags: <defaults>
</compile_context>

<pallas_src>
import jax
import jax.numpy as jnp
from jax.experimental import pallas as pl
from jax.experimental.pallas import tpu as pltpu

_EPS = 1e-12
_LANE = 128
_SUB = 8


def _target_block_rows():
    """Tile height (rows of 128 lanes). Bigger on v7x to amortize grid-step cost."""
    try:
        kind = jax.devices()[0].device_kind.lower()
    except Exception:
        return 1024
    if "v7" in kind or "7x" in kind:
        return 2048
    return 1024


def _static_pow(x, exponent):
    """pow with a statically-known exponent; small integer exponents use VALU
    multiplies (binary exponentiation) instead of exp/log on the EUP."""
    e = float(exponent)
    if e.is_integer() and 0.0 <= e <= 16.0:
        n = int(e)
        if n == 0:
            return jnp.ones_like(x)
        acc = None
        base = x
        while n:
            if n & 1:
                acc = base if acc is None else acc * base
            n >>= 1
            if n:
                base = base * base
        return acc
    return jnp.power(x, e)


def _reduce_rows_to_vreg(x, n_rows):
    """Sum a (n_rows, 128) tile down to a vreg-shaped (8, 128) partial.

    n_rows is a multiple of 8, so the reshape is layout-free and the reduction
    over the leading dim is just (n_rows/8 - 1) vector adds (no cross-lane work).
    """
    if n_rows == _SUB:
        return x
    return jnp.sum(x.reshape(n_rows // _SUB, _SUB, _LANE), axis=0)


def _make_neg_kernel(beta, gamma, sigmoid_clamp, ignore_high_fp,
                     m_valid, block_rows, n_blocks, blocks_per_core):
    """Builds the negative-branch streaming-reduction kernel (hyper-params baked in)."""

    def kernel(pred_ref, targ_ref, neg_out, acc_ref):
        c = pl.program_id(0)   # core / parallel axis
        i = pl.program_id(1)   # sequential block axis (per core)

        @pl.when(i == 0)
        def _init():
            acc_ref[...] = jnp.zeros_like(acc_ref)

        # ---- elementwise negative-branch loss on the tile (hot path) ----
        x = pred_ref[...].astype(jnp.float32)
        p = 0.5 * (jnp.tanh(0.5 * x) + 1.0)          # sigmoid via a single tanh (EUP)
        p = jnp.clip(p, sigmoid_clamp, 1.0 - sigmoid_clamp)
        t = targ_ref[...].astype(jnp.float32)
        neg = (jnp.log(1.0 - p + _EPS)
               * _static_pow(p, gamma)
               * _static_pow(1.0 - t, beta))
        if ignore_high_fp > 0:
            neg = jnp.where(p < ignore_high_fp, neg, 0.0)

        blk = c * blocks_per_core + i

        # Interior blocks: fully in-bounds -> mask-free fast path.
        @pl.when(blk < n_blocks - 1)
        def _interior():
            acc_ref[...] += _reduce_rows_to_vreg(neg, block_rows)

        # Last real block (possibly partial) and clamped out-of-range re-reads:
        # mask by flat element index (int32; wrapper asserts M fits).
        @pl.when(blk >= n_blocks - 1)
        def _tail():
            row_ids = (jax.lax.broadcasted_iota(jnp.int32, (block_rows, _LANE), 0)
                       + blk * block_rows)
            lane_ids = jax.lax.broadcasted_iota(jnp.int32, (block_rows, _LANE), 1)
            flat_ids = row_ids * _LANE + lane_ids
            masked = jnp.where(flat_ids < m_valid, neg, 0.0)
            acc_ref[...] += _reduce_rows_to_vreg(masked, block_rows)

        # ---- last step per core: single cross-lane reduce of the (8,128) acc ----
        @pl.when(i == blocks_per_core - 1)
        def _finalize():
            neg_out[...] = jnp.sum(acc_ref[...]).reshape(1, 1, 1)

    return kernel


def custom_gaussian_focal_loss(pred, target, pos_inds, weight=None,
                               alpha=-1.0, beta=4.0, gamma=2.0,
                               sigmoid_clamp=1e-4, ignore_high_fp=-1.0,
                               reduction='mean', avg_factor=None):
    # TODO(synk): elementwise `weight` has no effect on a scalar-returning inner
    # loss, and reduction='none' also returns the scalar sum (the inner loss
    # reduces to a scalar before mmdet's weight/reduce could apply per-element).
    pred_flat = pred.reshape(-1)
    targ_flat = target.reshape(-1)
    m = int(pred_flat.shape[0])
    assert m < 2**31 - 2**20, "in-kernel flat-index masking uses int32"

    # ---- positive branch: O(#pos) data-dependent gather, plain XLA ----
    pos_p = jax.nn.sigmoid(
        jnp.take(pred_flat, pos_inds.astype(jnp.int32)).astype(jnp.float32))
    pos_p = jnp.clip(pos_p, sigmoid_clamp, 1.0 - sigmoid_clamp)
    pos_loss = -jnp.sum(jnp.log(pos_p + _EPS) * _static_pow(1.0 - pos_p, gamma))

    # ---- negative branch: streamed Pallas reduction over all M elements ----
    target_rows = _target_block_rows()
    rows_needed = -(-m // _LANE)
    if rows_needed >= target_rows:
        # Large tensor: pad only to a lane multiple (no copy when m % 128 == 0);
        # the partial last block + in-kernel mask handle the tail.
        elem_pad = (-m) % _LANE
        block_rows = target_rows
    else:
        # Small tensor: pad to a full (8,128) multiple so block_rows == rows is a
        # legal sublane-aligned block; pad cost is negligible at this size.
        elem_pad = (-m) % (_SUB * _LANE)
        block_rows = (m + elem_pad) // _LANE
    if elem_pad:
        pred_flat = jnp.pad(pred_flat, (0, elem_pad))
        targ_flat = jnp.pad(targ_flat, (0, elem_pad))
    rows = (m + elem_pad) // _LANE
    pred2 = pred_flat.reshape(rows, _LANE)     # metadata-only reshape (contiguous)
    targ2 = targ_flat.reshape(rows, _LANE)

    n_blocks = -(-rows // block_rows)
    # Leading "parallel" axis splits the reduction across TensorCores on
    # multi-core parts; harmless (one extra masked re-read at most) on 1-TC chips.
    # TODO(synk): verify on v7x via xprof; switch to pltpu.CORE_PARALLEL if the
    # plain "parallel" axis does not engage both TensorCores.
    n_cores = 2
    blocks_per_core = -(-n_blocks // n_cores)

    kernel = _make_neg_kernel(beta, gamma, sigmoid_clamp, ignore_high_fp,
                              m, block_rows, n_blocks, blocks_per_core)

    def tile_map(c, i):
        # Clamp so out-of-range steps re-read the last tile; those re-reads are
        # fully masked in-kernel (flat index >= M).
        return (jnp.minimum(c * blocks_per_core + i, n_blocks - 1), 0)

    neg_part = pl.pallas_call(
        kernel,
        out_shape=jax.ShapeDtypeStruct((n_cores, 1, 1), jnp.float32),
        grid_spec=pltpu.PrefetchScalarGridSpec(
            num_scalar_prefetch=0,
            grid=(n_cores, blocks_per_core),
            in_specs=[
                pl.BlockSpec((block_rows, _LANE), tile_map),   # pred tiles
                pl.BlockSpec((block_rows, _LANE), tile_map),   # target tiles
            ],
            out_specs=pl.BlockSpec((1, 1, 1), lambda c, i: (c, 0, 0)),
            scratch_shapes=[pltpu.VMEM((_SUB, _LANE), jnp.float32)],
        ),
        compiler_params=pltpu.CompilerParams(
            dimension_semantics=("parallel", "arbitrary")),
    )(pred2, targ2)

    neg_loss = -jnp.sum(neg_part)
    if alpha >= 0:
        pos_loss = alpha * pos_loss
        neg_loss = (1.0 - alpha) * neg_loss
    loss = pos_loss + neg_loss

    # @weighted_loss: the inner loss is already a scalar sum, so 'mean'/'sum'/
    # 'none' leave it unchanged; avg_factor divides under 'mean'.
    if reduction == 'mean' and avg_factor is not None:
        loss = loss / avg_factor
    return loss


class CustomGaussianFocalLoss:
    """JAX/Pallas port of mmdet CustomGaussianFocalLoss (forward only)."""

    def __init__(self, alpha=-1.0, beta=4.0, gamma=2.0, sigmoid_clamp=1e-4,
                 ignore_high_fp=-1.0, reduction='mean', loss_weight=1.0):
        self.alpha = alpha
        self.beta = beta
        self.gamma = gamma
        self.sigmoid_clamp = sigmoid_clamp
        self.ignore_high_fp = ignore_high_fp
        self.reduction = reduction
        self.loss_weight = loss_weight

    def __call__(self, pred, target, pos_inds, weight=None, avg_factor=None,
                 reduction_override=None):
        assert reduction_override in (None, 'none', 'mean', 'sum')
        reduction = reduction_override if reduction_override else self.reduction
        return self.loss_weight * custom_gaussian_focal_loss(
            pred, target, pos_inds, weight=weight,
            alpha=self.alpha, beta=self.beta, gamma=self.gamma,
            sigmoid_clamp=self.sigmoid_clamp,
            ignore_high_fp=self.ignore_high_fp,
            reduction=reduction, avg_factor=avg_factor)


def _reference_loss(pred, target, pos_inds, alpha=-1.0, beta=4.0, gamma=2.0,
                    sigmoid_clamp=1e-4, ignore_high_fp=-1.0):
    """Pure-JAX reference matching the PyTorch semantics."""
    p = jnp.clip(jax.nn.sigmoid(pred.reshape(-1).astype(jnp.float32)),
                 sigmoid_clamp, 1.0 - sigmoid_clamp)
    t = target.reshape(-1).astype(jnp.float32)
    neg_w = _static_pow(1.0 - t, beta)
    pos_p = p[pos_inds]
    pos = jnp.log(pos_p + _EPS) * _static_pow(1.0 - pos_p, gamma)
    neg = jnp.log(1.0 - p + _EPS) * _static_pow(p, gamma) * neg_w
    if ignore_high_fp > 0:
        neg = (p < ignore_high_fp).astype(jnp.float32) * neg
    pos_l = -jnp.sum(pos)
    neg_l = -jnp.sum(neg)
    if alpha >= 0:
        pos_l = alpha * pos_l
        neg_l = (1.0 - alpha) * neg_l
    return pos_l + neg_l


if __name__ == "__main__":
    key = jax.random.PRNGKey(0)
    k1, k2, k3 = jax.random.split(key, 3)

    N, C, H, W = 2, 4, 16, 16
    pred = jax.random.normal(k1, (N, C, H, W), dtype=jnp.float32)
    target = jax.random.uniform(k2, (N, C, H, W), dtype=jnp.float32) * 0.95

    # pick a few positive locations (flat indices) and set their target to 1.0
    M = N * C * H * W
    pos_inds = jax.random.choice(k3, M, shape=(5,), replace=False).astype(jnp.int32)
    target = target.reshape(-1).at[pos_inds].set(1.0).reshape(N, C, H, W)

    loss_mod = CustomGaussianFocalLoss()  # defaults: alpha=-1, beta=4, gamma=2
    out = loss_mod(pred, target, pos_inds)
    out = jax.block_until_ready(out)

    ref = _reference_loss(pred, target, pos_inds)
    assert jnp.allclose(out, ref, rtol=1e-4, atol=1e-4), (out, ref)
    print("KERNEL_OK")
</pallas_src>

<mosaic_0001>
module attributes {stable_mosaic.version = 11 : i64} {
  func.func @kernel(%arg0: i32, %arg1: i32, %arg2: memref<16x128xf32, #tpu.memory_space<vmem>>, %arg3: memref<16x128xf32, #tpu.memory_space<vmem>>, %arg4: memref<1x1x1xf32, #tpu.memory_space<vmem>>, %arg5: memref<8x128xf32, #tpu.memory_space<vmem>>) attributes {dimension_semantics = [#tpu.dimension_semantics<parallel>, #tpu.dimension_semantics<arbitrary>], iteration_bounds = array<i64: 2, 1>, scalar_prefetch = 0 : i64, scratch_operands = 1 : i64, tpu.core_type = #tpu.core_type<tc>, window_params = [{transform_indices = @transform_0, window_bounds = array<i64: 16, 128>}, {transform_indices = @transform_1, window_bounds = array<i64: 16, 128>}, {transform_indices = @transform_2, window_bounds = array<i64: 1, 1, 1>}]} {
    %c0_i32 = arith.constant 0 : i32
    %0 = arith.cmpi eq, %arg1, %c0_i32 : i32
    %1 = arith.extui %0 : i1 to i32
    %c0_i32_0 = arith.constant 0 : i32
    %2 = arith.cmpi ne, %1, %c0_i32_0 : i32
    scf.if %2 {
      %cst_17 = arith.constant 0.000000e+00 : f32
      %39 = vector.broadcast %cst_17 : f32 to vector<8x128xf32>
      %c0_18 = arith.constant 0 : index
      %c0_19 = arith.constant 0 : index
      %40 = vector.load %arg5[%c0_18, %c0_19] : memref<8x128xf32, #tpu.memory_space<vmem>>, vector<8x128xf32>
      tpu.vector_store %arg5[%c0_18, %c0_19], %39 {strides = array<i32>} : memref<8x128xf32, #tpu.memory_space<vmem>>, vector<8x128xf32>,
    } else {
    }
    %c0 = arith.constant 0 : index
    %c0_1 = arith.constant 0 : index
    %3 = vector.load %arg2[%c0, %c0_1] : memref<16x128xf32, #tpu.memory_space<vmem>>, vector<16x128xf32>
    %cst = arith.constant 5.000000e-01 : f32
    %4 = vector.broadcast %cst : f32 to vector<16x128xf32>
    %5 = arith.mulf %4, %3 : vector<16x128xf32>
    %6 = math.tanh %5 : vector<16x128xf32>
    %cst_2 = arith.constant 1.000000e+00 : f32
    %7 = vector.broadcast %cst_2 : f32 to vector<16x128xf32>
    %8 = arith.addf %6, %7 : vector<16x128xf32>
    %cst_3 = arith.constant 5.000000e-01 : f32
    %9 = vector.broadcast %cst_3 : f32 to vector<16x128xf32>
    %10 = arith.mulf %9, %8 : vector<16x128xf32>
    %cst_4 = arith.constant 9.99999974E-5 : f32
    %cst_5 = arith.constant 0.999899983 : f32
    %11 = vector.broadcast %cst_4 : f32 to vector<16x128xf32>
    %12 = arith.maximumf %11, %10 : vector<16x128xf32>
    %13 = vector.broadcast %cst_5 : f32 to vector<16x128xf32>
    %14 = arith.minimumf %13, %12 : vector<16x128xf32>
    %c0_6 = arith.constant 0 : index
    %c0_7 = arith.constant 0 : index
    %15 = vector.load %arg3[%c0_6, %c0_7] : memref<16x128xf32, #tpu.memory_space<vmem>>, vector<16x128xf32>
    %cst_8 = arith.constant 1.000000e+00 : f32
    %16 = vector.broadcast %cst_8 : f32 to vector<16x128xf32>
    %17 = arith.subf %16, %14 : vector<16x128xf32>
    %cst_9 = arith.constant 9.99999996E-13 : f32
    %18 = vector.broadcast %cst_9 : f32 to vector<16x128xf32>
    %19 = arith.addf %17, %18 : vector<16x128xf32>
    %20 = math.log %19 : vector<16x128xf32>
    %21 = arith.mulf %14, %14 : vector<16x128xf32>
    %22 = arith.mulf %20, %21 : vector<16x128xf32>
    %cst_10 = arith.constant 1.000000e+00 : f32
    %23 = vector.broadcast %cst_10 : f32 to vector<16x128xf32>
    %24 = arith.subf %23, %15 : vector<16x128xf32>
    %25 = arith.mulf %24, %24 : vector<16x128xf32>
    %26 = arith.mulf %25, %25 : vector<16x128xf32>
    %27 = arith.mulf %22, %26 : vector<16x128xf32>
    %c1_i32 = arith.constant 1 : i32
    %28 = arith.muli %arg0, %c1_i32 : i32
    %29 = arith.addi %28, %arg1 : i32
    %c0_i32_11 = arith.constant 0 : i32
    %30 = arith.cmpi slt, %29, %c0_i32_11 : i32
    %31 = arith.extui %30 : i1 to i32
    %c0_i32_12 = arith.constant 0 : i32
    %32 = arith.cmpi ne, %31, %c0_i32_12 : i32
    scf.if %32 {
      %c0_17 = arith.constant 0 : index
      %c0_18 = arith.constant 0 : index
      %39 = vector.load %arg5[%c0_17, %c0_18] : memref<8x128xf32, #tpu.memory_space<vmem>>, vector<8x128xf32>
      %40 = vector.shape_cast %27 : vector<16x128xf32> to vector<2x8x128xf32>
      %cst_19 = arith.constant dense<0.000000e+00> : vector<8x128xf32>
      %41 = vector.multi_reduction <add>, %40, %cst_19 [0] : vector<2x8x128xf32> to vector<8x128xf32>
      %42 = arith.addf %39, %41 : vector<8x128xf32>
      %c0_20 = arith.constant 0 : index
      %c0_21 = arith.constant 0 : index
      %43 = vector.load %arg5[%c0_20, %c0_21] : memref<8x128xf32, #tpu.memory_space<vmem>>, vector<8x128xf32>
      tpu.vector_store %arg5[%c0_20, %c0_21], %42 {strides = array<i32>} : memref<8x128xf32, #tpu.memory_space<vmem>>, vector<8x128xf32>,
    } else {
    }
    %c0_i32_13 = arith.constant 0 : i32
    %33 = arith.cmpi sge, %29, %c0_i32_13 : i32
    %34 = arith.extui %33 : i1 to i32
    %c0_i32_14 = arith.constant 0 : i32
    %35 = arith.cmpi ne, %34, %c0_i32_14 : i32
    scf.if %35 {
      %39 = tpu.iota {dimensions = array<i32: 0>} : vector<16x128xi32>
      %c16_i32 = arith.constant 16 : i32
      %40 = arith.muli %29, %c16_i32 : i32
      %41 = vector.broadcast %40 : i32 to vector<16x128xi32>
      %42 = arith.addi %39, %41 : vector<16x128xi32>
      %43 = tpu.iota {dimensions = array<i32: 1>} : vector<16x128xi32>
      %c128_i32 = arith.constant 128 : i32
      %44 = vector.broadcast %c128_i32 : i32 to vector<16x128xi32>
      %45 = arith.muli %42, %44 : vector<16x128xi32>
      %46 = arith.addi %45, %43 : vector<16x128xi32>
      %c2048_i32 = arith.constant 2048 : i32
      %47 = vector.broadcast %c2048_i32 : i32 to vector<16x128xi32>
      %48 = arith.cmpi slt, %46, %47 : vector<16x128xi32>
      %cst_17 = arith.constant 0.000000e+00 : f32
      %49 = vector.broadcast %cst_17 : f32 to vector<16x128xf32>
      %50 = arith.select %48, %27, %49 : vector<16x128xi1>, vector<16x128xf32>
      %c0_18 = arith.constant 0 : index
      %c0_19 = arith.constant 0 : index
      %51 = vector.load %arg5[%c0_18, %c0_19] : memref<8x128xf32, #tpu.memory_space<vmem>>, vector<8x128xf32>
      %52 = vector.shape_cast %50 : vector<16x128xf32> to vector<2x8x128xf32>
      %cst_20 = arith.constant dense<0.000000e+00> : vector<8x128xf32>
      %53 = vector.multi_reduction <add>, %52, %cst_20 [0] : vector<2x8x128xf32> to vector<8x128xf32>
      %54 = arith.addf %51, %53 : vector<8x128xf32>
      %c0_21 = arith.constant 0 : index
      %c0_22 = arith.constant 0 : index
      %55 = vector.load %arg5[%c0_21, %c0_22] : memref<8x128xf32, #tpu.memory_space<vmem>>, vector<8x128xf32>
      tpu.vector_store %arg5[%c0_21, %c0_22], %54 {strides = array<i32>} : memref<8x128xf32, #tpu.memory_space<vmem>>, vector<8x128xf32>,
    } else {
    }
    %c0_i32_15 = arith.constant 0 : i32
    %36 = arith.cmpi eq, %arg1, %c0_i32_15 : i32
    %37 = arith.extui %36 : i1 to i32
    %c0_i32_16 = arith.constant 0 : i32
    %38 = arith.cmpi ne, %37, %c0_i32_16 : i32
    scf.if %38 {
      %c0_17 = arith.constant 0 : index
      %c0_18 = arith.constant 0 : index
      %39 = vector.load %arg5[%c0_17, %c0_18] : memref<8x128xf32, #tpu.memory_space<vmem>>, vector<8x128xf32>
      %40 = vector.shape_cast %39 : vector<8x128xf32> to vector<1x8x128xf32>
      %cst_19 = arith.constant dense<0.000000e+00> : vector<1xf32>
      %41 = vector.multi_reduction <add>, %40, %cst_19 [1, 2] : vector<1x8x128xf32> to vector<1xf32>
      %42 = vector.shape_cast %41 : vector<1xf32> to vector<1x1x1xf32>
      %43 = vector.extract %42[0, 0, 0] : f32 from vector<1x1x1xf32>
      %44 = vector.broadcast %43 : f32 to vector<1x1x1xf32>
      %c0_20 = arith.constant 0 : index
      %c0_21 = arith.constant 0 : index
      %c0_22 = arith.constant 0 : index
      %45 = vector.load %arg4[%c0_20, %c0_21, %c0_22] : memref<1x1x1xf32, #tpu.memory_space<vmem>>, vector<1x1x1xf32>
      tpu.vector_store %arg4[%c0_20, %c0_21, %c0_22], %44 {strides = array<i32>} : memref<1x1x1xf32, #tpu.memory_space<vmem>>, vector<1x1x1xf32>,
    } else {
    }
    return
  }
  func.func @transform_0(%arg0: i32, %arg1: i32) -> (i32, i32) {
    %c1_i32 = arith.constant 1 : i32
    %0 = arith.muli %arg0, %c1_i32 : i32
    %1 = arith.addi %0, %arg1 : i32
    %c0_i32 = arith.constant 0 : i32
    %2 = arith.minsi %1, %c0_i32 : i32
    %c0_i32_0 = arith.constant 0 : i32
    %c0_i32_1 = arith.constant 0 : i32
    return %2, %c0_i32_0 : i32, i32
  }
  func.func @transform_1(%arg0: i32, %arg1: i32) -> (i32, i32) {
    %c1_i32 = arith.constant 1 : i32
    %0 = arith.muli %arg0, %c1_i32 : i32
    %1 = arith.addi %0, %arg1 : i32
    %c0_i32 = arith.constant 0 : i32
    %2 = arith.minsi %1, %c0_i32 : i32
    %c0_i32_0 = arith.constant 0 : i32
    %c0_i32_1 = arith.constant 0 : i32
    return %2, %c0_i32_0 : i32, i32
  }
  func.func @transform_2(%arg0: i32, %arg1: i32) -> (i32, i32, i32) {
    %c0_i32 = arith.constant 0 : i32
    %c0_i32_0 = arith.constant 0 : i32
    %c0_i32_1 = arith.constant 0 : i32
    return %arg0, %c0_i32, %c0_i32_0 : i32, i32, i32
  }
}

</mosaic_0001>

<llo_original>
// kernel: tpu_custom_call.1
$region0: #{tpu_custom_call.1}
  #allocation0 [shape = 'u32[]', space=smem, size = 0x4, offset = 0x4, fixed_abs, tag = 'smem constant byte address 0x4 - core index']
  #allocation1 [shape = 'u32[144,128]{1,0:T(1,128)}', space=vmem, size = 0x12000, scoped, tag = 'internal scratch']
  #allocation2 [shape = 'f32[8,128]{1,0:T(8,128)}', space=vmem, size = 0x1000, scoped, tag = 'scratch operand']
  %s0 = inlined_call_operand.hbm [shape: f32[16,128], index: 0, kind: input, shape index: {}]
  %s1 = inlined_call_operand.hbm [shape: f32[16,128], index: 1, kind: input, shape index: {}]
  %s2 = inlined_call_operand.vmem [shape: f32[2,1,1], index: 2, kind: output, shape index: {}]
  %s3 = sld [smem:[#allocation0]]
  $region65: #{tpu_custom_call.1} parent=0
    _
  %s5 = ssub.s32 1, %s3
  %s6 = scalar_select 0, %s5, %s3
  $region1: #{tpu_custom_call.1} parent=0
    #allocation3 [shape = 'u8[16384]{0}', space=vmem, size = 0x4000, scoped, tag = 'input window, operand 0']
    #allocation4 [shape = 's32[2]{0}', space=sflag, size = 0x8, scoped, tag = 'scoped memory for tpu_custom_call.1']
    #allocation5 [shape = 'u8[16384]{0}', space=vmem, size = 0x4000, scoped, tag = 'input window, operand 1']
    #allocation6 [shape = 's32[2]{0}', space=sflag, size = 0x8, scoped, tag = 'scoped memory for tpu_custom_call.1']
    %7 = vsyncpa [#allocation4], 0
    %s8 = scalar_lea.sflag [#allocation4], 1
    %9 = vsyncpa %s8, 0
    %10 = vsyncpa [#allocation6], 0
    %s11 = scalar_lea.sflag [#allocation6], 1
    %12 = vsyncpa %s11, 0
    loop: start=0, step=1, limit=4
    $region2: #{tpu_custom_call.1} parent=1 // loop_pre_header
      _
    $region3: #{tpu_custom_call.1} parent=1 // loop_header
      %s14 = sphi 0, %s18
      %p15 = scmp.ge.s32.totalorder %s14, 4
      %s21 = sphi 0, %s33
      %s22 = sphi 0, %s29
      %s23 = sphi 0, %s21
      %s24 = sphi 0, %s22
      %s25 = sphi 0, %s23
      %s26 = sphi 0, %s24
      %s42 = sphi 0, %s44
      %s45 = sphi 0, %s42
      %s46 = sphi 0, %s45
      %s62 = sphi 0, %s46
      %s74 = sphi 0, %s76
      %s77 = sphi 0, %s74
      %s78 = sphi 0, %s77
      %s94 = sphi 0, %s78
      %s100 = sphi 0, %s102
      %s103 = sphi 0, %s100
      %s104 = sphi 0, %s103
      %s120 = sphi 0, %s104
    $region4: #{tpu_custom_call.1} parent=1 // loop_header_branch
      %17 = sbr.rel (%p15) target = $region8
    $region5: #{tpu_custom_call.1} parent=1 // loop_body
      %s19 = ssub.s32 %s14, 1
      %s20 = ssub.s32 %s14, 2
      %s27 = sadd.s32 1, %s22
      %p28 = scmp.ge.s32.totalorder %s27, 1
      %s29 = scalar_select %p28, 0, %s27
      %s30 = sadd.s32 1, %s21
      %s31 = scalar_select %p28, %s30, %s21
      %p32 = scmp.ge.s32.totalorder %s31, 2
      %s33 = scalar_select %p32, 0, %s31
      %s34 = sadd.s32 %s21, %s22
      %p35 = scmp.lt.s32.totalorder %s34, 0
      %s36 = scalar_select %p35, %s34, 0
      %s37 = sadd.s32 %s33, %s29
      %p38 = scmp.lt.s32.totalorder %s37, 0
      %s39 = scalar_select %p38, %s37, 0
      %s40 = ssub.s32 %s36, %s39
      %p41 = scmp.eq.s32.totalorder %s40, 0
      %s43 = sadd.s32 %s42, 1
      %s44 = scalar_select %p41, %s42, %s43
      %p47 = pneg %p41
      %p48 = scmp.eq.s32.totalorder %s14, 1
      %p49 = por %p47, %p48
      %p50 = scmp.ne.s32.totalorder %s42, %s45
      %p51 = scmp.eq.s32.totalorder %s14, 0
      %p52 = por %p50, %p51
      %p53 = scmp.ne.s32.totalorder %s42, %s45
      %p54 = scmp.eq.s32.totalorder %s19, 1
      %p55 = por %p53, %p54
      %p56 = scmp.ne.s32.totalorder %s45, %s46
      %p57 = scmp.eq.s32.totalorder %s19, 0
      %p58 = por %p56, %p57
      %p59 = scmp.ne.s32.totalorder %s45, %s46
      %p60 = scmp.eq.s32.totalorder %s20, 1
      %p61 = por %p59, %p60
      %p63 = scmp.ne.s32.totalorder %s46, %s62
      %p64 = scmp.eq.s32.totalorder %s20, 0
      %p65 = por %p63, %p64
      %s66 = sadd.s32 %s21, %s22
      %p67 = scmp.lt.s32.totalorder %s66, 0
      %s68 = scalar_select %p67, %s66, 0
      %s69 = sadd.s32 %s33, %s29
      %p70 = scmp.lt.s32.totalorder %s69, 0
      %s71 = scalar_select %p70, %s69, 0
      %s72 = ssub.s32 %s68, %s71
      %p73 = scmp.eq.s32.totalorder %s72, 0
      %s75 = sadd.s32 %s74, 1
      %s76 = scalar_select %p73, %s74, %s75
      %p79 = pneg %p73
      %p80 = scmp.eq.s32.totalorder %s14, 1
      %p81 = por %p79, %p80
      %p82 = scmp.ne.s32.totalorder %s74, %s77
      %p83 = scmp.eq.s32.totalorder %s14, 0
      %p84 = por %p82, %p83
      %p85 = scmp.ne.s32.totalorder %s74, %s77
      %p86 = scmp.eq.s32.totalorder %s19, 1
      %p87 = por %p85, %p86
      %p88 = scmp.ne.s32.totalorder %s77, %s78
      %p89 = scmp.eq.s32.totalorder %s19, 0
      %p90 = por %p88, %p89
      %p91 = scmp.ne.s32.totalorder %s77, %s78
      %p92 = scmp.eq.s32.totalorder %s20, 1
      %p93 = por %p91, %p92
      %p95 = scmp.ne.s32.totalorder %s78, %s94
      %p96 = scmp.eq.s32.totalorder %s20, 0
      %p97 = por %p95, %p96
      %s98 = ssub.s32 %s21, %s33
      %p99 = scmp.eq.s32.totalorder %s98, 0
      %s101 = sadd.s32 %s100, 1
      %s102 = scalar_select %p99, %s100, %s101
      %p105 = pneg %p99
      %p106 = scmp.eq.s32.totalorder %s14, 1
      %p107 = por %p105, %p106
      %p108 = scmp.ne.s32.totalorder %s100, %s103
      %p109 = scmp.eq.s32.totalorder %s14, 0
      %p110 = por %p108, %p109
      %p111 = scmp.ne.s32.totalorder %s100, %s103
      %p112 = scmp.eq.s32.totalorder %s19, 1
      %p113 = por %p111, %p112
      %p114 = scmp.ne.s32.totalorder %s103, %s104
      %p115 = scmp.eq.s32.totalorder %s19, 0
      %p116 = por %p114, %p115
      %p117 = scmp.ne.s32.totalorder %s103, %s104
      %p118 = scmp.eq.s32.totalorder %s20, 1
      %p119 = por %p117, %p118
      %p121 = scmp.ne.s32.totalorder %s104, %s120
      %p122 = scmp.eq.s32.totalorder %s20, 0
      %p123 = por %p121, %p122
      %p124 = scmp.le.s32.totalorder 1, %s14
      %p125 = scmp.lt.s32.totalorder %s14, 3
      %p126 = pnand %p124, %p125
      %p127 = pneg %p126
      // Predicated region
      $region9: #{tpu_custom_call.1} parent=5 // pred_check
        _
      $region10: #{tpu_custom_call.1} parent=5 // pred_check_branch
        %129 = sbr.rel (%p126) target = $region12
      $region11: #{tpu_custom_call.1} parent=5 // pred_region
        %s130 = ssub.s32 %s14, 1
      $region12: #{tpu_custom_call.1} parent=5 // pred_fallthru
        _
      %p131 = scmp.lt.s32.totalorder %s14, 2
      // Predicated region
      $region13: #{tpu_custom_call.1} parent=5 // pred_check
        %p132 = pneg %p131
      $region14: #{tpu_custom_call.1} parent=5 // pred_check_branch
        %134 = sbr.rel (%p132) target = $region16
      $region15: #{tpu_custom_call.1} parent=5 // pred_region
        // Predicated region
        $region17: #{tpu_custom_call.1} parent=15 // pred_check
          %p135 = pneg %p52
        $region18: #{tpu_custom_call.1} parent=15 // pred_check_branch
          %137 = sbr.rel (%p135) target = $region20
        $region19: #{tpu_custom_call.1} parent=15 // pred_region
          %s138 = sand.u32 %s42, 1
          %s139 = scalar_lea.sflag [#allocation4], %s138
          %s140 = sand.u32 %s42, 1
          %s141 = smul.addr %s140, 16
          %s142 = scalar_lea.vmem [#allocation3], %s141
          %s143 = sadd.s32 %s21, %s22
          %p144 = scmp.lt.s32.totalorder %s143, 0
          %s145 = scalar_select %p144, %s143, 0
          %s146 = smul.u32 2, %s145
          %s148 = ssub.s32 256, 256
          %149 = vsyncadd %s139, %s148
          %s150 = smul.addr %s146, 128
          %s151 = scalar_lea.hbm %s0, %s150
          %s152 = sshll.u32 %s142, 4
          %s153 = int_to_ptr.vmem [resolvable:$true] %s152
          %158 = dma.hbm_to_vmem [thread:$0]  %s151, 256, %s153, %s139, 128, 128, 8
        $region20: #{tpu_custom_call.1} parent=15 // pred_fallthru
          _
        // Predicated region
        $region21: #{tpu_custom_call.1} parent=15 // pred_check
          %p159 = pneg %p84
        $region22: #{tpu_custom_call.1} parent=15 // pred_check_branch
          %161 = sbr.rel (%p159) target = $region24
        $region23: #{tpu_custom_call.1} parent=15 // pred_region
          %s162 = sand.u32 %s74, 1
          %s163 = scalar_lea.sflag [#allocation6], %s162
          %s164 = sand.u32 %s74, 1
          %s165 = smul.addr %s164, 16
          %s166 = scalar_lea.vmem [#allocation5], %s165
          %s167 = sadd.s32 %s21, %s22
          %p168 = scmp.lt.s32.totalorder %s167, 0
          %s169 = scalar_select %p168, %s167, 0
          %s170 = smul.u32 2, %s169
          %s172 = ssub.s32 256, 256
          %173 = vsyncadd %s163, %s172
          %s174 = smul.addr %s170, 128
          %s175 = scalar_lea.hbm %s1, %s174
          %s176 = sshll.u32 %s166, 4
          %s177 = int_to_ptr.vmem [resolvable:$true] %s176
          %182 = dma.hbm_to_vmem [thread:$0]  %s175, 256, %s177, %s163, 128, 128, 8
        $region24: #{tpu_custom_call.1} parent=15 // pred_fallthru
          _
      $region16: #{tpu_custom_call.1} parent=5 // pred_fallthru
        _
      %p183 = scmp.le.s32.totalorder 1, %s14
      %p184 = scmp.lt.s32.totalorder %s14, 3
      %p185 = pnand %p183, %p184
      %p186 = pneg %p185
      // Predicated region
      $region25: #{tpu_custom_call.1} parent=5 // pred_check
        _
      $region26: #{tpu_custom_call.1} parent=5 // pred_check_branch
        %188 = sbr.rel (%p185) target = $region28
      $region27: #{tpu_custom_call.1} parent=5 // pred_region
        %s189 = ssub.s32 %s14, 1
        %s190 = sand.u32 %s45, 1
        %s191 = scalar_lea.sflag [#allocation4], %s190
        %s192 = sand.u32 %s45, 1
        %s193 = smul.addr %s192, 16
        %s194 = scalar_lea.vmem [#allocation3], %s193
        // Predicated region
        $region29: #{tpu_custom_call.1} parent=27 // pred_check
          %p195 = pneg %p58
        $region30: #{tpu_custom_call.1} parent=27 // pred_check_branch
          %197 = sbr.rel (%p195) target = $region32
        $region31: #{tpu_custom_call.1} parent=27 // pred_region
          %198 = dma.done %s191, 256
        $region32: #{tpu_custom_call.1} parent=27 // pred_fallthru
          _
        %s199 = sand.u32 %s77, 1
        %s200 = scalar_lea.sflag [#allocation6], %s199
        %s201 = sand.u32 %s77, 1
        %s202 = smul.addr %s201, 16
        %s203 = scalar_lea.vmem [#allocation5], %s202
        // Predicated region
        $region33: #{tpu_custom_call.1} parent=27 // pred_check
          %p204 = pneg %p90
        $region34: #{tpu_custom_call.1} parent=27 // pred_check_branch
          %206 = sbr.rel (%p204) target = $region36
        $region35: #{tpu_custom_call.1} parent=27 // pred_region
          %207 = dma.done %s200, 256
        $region36: #{tpu_custom_call.1} parent=27 // pred_fallthru
          _
        %s208 = sand.u32 %s45, 1
        %s209 = scalar_lea.sflag [#allocation4], %s208
        %s210 = sand.u32 %s45, 1
        %s211 = smul.addr %s210, 16
        %s212 = scalar_lea.vmem [#allocation3], %s211
        %p213 = pneg %p58
        %p214 = pneg %p55
        %s215 = sand.u32 %s77, 1
        %s216 = scalar_lea.sflag [#allocation6], %s215
        %s217 = sand.u32 %s77, 1
        %s218 = smul.addr %s217, 16
        %s219 = scalar_lea.vmem [#allocation5], %s218
        %p220 = pneg %p90
        %p221 = pneg %p87
        %p222 = pneg %p116
        %p223 = pneg %p113
        %p224 = scmp.lt.s32.totalorder %s23, 1
        %s225 = scalar_select %p224, %s23, 1
        %s226 = scalar_lea.vmem %s2, %s225
        %s227 = sadd.s32 %s23, %s24
        %p228 = scmp.lt.s32.totalorder %s227, 0
        %s229 = scalar_select %p228, %s227, 0
        %s230 = smul.u32 2, %s229
        %s231 = sadd.s32 %s23, %s24
        %p232 = scmp.lt.s32.totalorder %s231, 0
        %s233 = scalar_select %p232, %s231, 0
        %s234 = smul.u32 2, %s233
        %p235 = scmp.lt.s32.totalorder %s23, 1
        %s236 = scalar_select %p235, %s23, 1
        %s237 = scalar_lea.vmem %s2, %s236
        %p238 = scmp.eq.s32.totalorder %s24, 0
        // Predicated region
        $region37: #{tpu_custom_call.1} parent=27 // pred_check
          %p239 = pneg %p238
        $region38: #{tpu_custom_call.1} parent=27 // pred_check_branch
          %241 = sbr.rel (%p239) target = $region40
        $region39: #{tpu_custom_call.1} parent=27 // pred_region
          %242 = vst [vmem:[#allocation2] sm:$0xff] 0.0
        $region40: #{tpu_custom_call.1} parent=27 // pred_fallthru
          _
        %v243 = vld [vmem:[%s194] sm:$0xff]
        %v244 = vld [vmem:[%s194 + $0x8] sm:$0xff]
        %v245 = vmul.f32 %v243, 0.5
        %v246 = vmul.f32 %v244, 0.5
        %v247 = vtanh.pop %v245
        %v248 = vtanh.pop %v246
        %v249 = vadd.f32 %v247, 1.0
        %v250 = vadd.f32 %v248, 1.0
        %v251 = vmul.f32 %v249, 0.5
        %v252 = vmul.f32 %v250, 0.5
        %v253 = vmax.f32 %v251, 0.0001
        %v254 = vmax.f32 %v252, 0.0001
        %v255 = vmin.f32 %v253, 0.9999
        %v256 = vmin.f32 %v254, 0.9999
        %v257 = vld [vmem:[%s203] sm:$0xff]
        %v258 = vld [vmem:[%s203 + $0x8] sm:$0xff]
        %v259 = vsub.f32 1.0, %v255
        %v260 = vsub.f32 1.0, %v256
        %v261 = vadd.f32 %v259, 1e-12
        %v262 = vadd.f32 %v260, 1e-12
        %v263 = vlog2.pop %v261
        %v264 = vmul.f32 %v263, 0.6931472
        %v265 = vlog2.pop %v262
        %v266 = vmul.f32 %v265, 0.6931472
        %v267 = vmul.f32 %v255, %v255
        %v268 = vmul.f32 %v256, %v256
        %v269 = vmul.f32 %v264, %v267
        %v270 = vmul.f32 %v266, %v268
        %v271 = vsub.f32 1.0, %v257
        %v272 = vsub.f32 1.0, %v258
        %v273 = vmul.f32 %v271, %v271
        %v274 = vmul.f32 %v272, %v272
        %v275 = vmul.f32 %v273, %v273
        %v276 = vmul.f32 %v274, %v274
        %v277 = vmul.f32 %v269, %v275
        %v278 = vmul.f32 %v270, %v276
        %s279 = sadd.s32 %s23, %s24
        %p280 = scmp.lt.s32.totalorder %s279, 0
        // Predicated region
        $region41: #{tpu_custom_call.1} parent=27 // pred_check
          %p281 = pneg %p280
        $region42: #{tpu_custom_call.1} parent=27 // pred_check_branch
          %283 = sbr.rel (%p281) target = $region44
        $region43: #{tpu_custom_call.1} parent=27 // pred_region
          %v284 = vld [vmem:[#allocation2] sm:$0xff]
          %v285 = vadd.f32 %v277, %v278
          %v286 = vadd.f32 %v284, %v285
          %287 = vst [vmem:[#allocation2] sm:$0xff] %v286
        $region44: #{tpu_custom_call.1} parent=27 // pred_fallthru
          _
        %p288 = scmp.ge.s32.totalorder %s279, 0
        // Predicated region
        $region45: #{tpu_custom_call.1} parent=27 // pred_check
          %p289 = pneg %p288
        $region46: #{tpu_custom_call.1} parent=27 // pred_check_branch
          %291 = sbr.rel (%p289) target = $region48
        $region47: #{tpu_custom_call.1} parent=27 // pred_region
          %v292 = vlaneseq
          %v293 = vshrl.u32 %v292, 7
          %v294 = vadd.s32 %v293, 8
          %s295 = smul.u32 %s279, 16
          %v296 = vstv %s295
          %v297 = vadd.s32 %v293, %v296
          %v298 = vadd.s32 %v294, %v296
          %v299 = vlaneseq
          %v300 = vand.u32 %v299, 127
          %v301 = vmul.u32 %v297, 128
          %v302 = vmul.u32 %v298, 128
          %v303 = vadd.s32 %v301, %v300
          %v304 = vadd.s32 %v302, %v300
          %vm305 = vcmp.lt.s32.totalorder %v303, 2048
          %vm306 = vcmp.lt.s32.totalorder %v304, 2048
          %v307 = vsel %vm305, %v277, 0.0
          %v308 = vsel %vm306, %v278, 0.0
          %v309 = vld [vmem:[#allocation2] sm:$0xff]
          %v310 = vadd.f32 %v307, %v308
          %v311 = vadd.f32 %v309, %v310
          %312 = vst [vmem:[#allocation2] sm:$0xff] %v311
        $region48: #{tpu_custom_call.1} parent=27 // pred_fallthru
          _
        // Predicated region
        $region49: #{tpu_custom_call.1} parent=27 // pred_check
          %p313 = pneg %p238
        $region50: #{tpu_custom_call.1} parent=27 // pred_check_branch
          %315 = sbr.rel (%p313) target = $region52
        $region51: #{tpu_custom_call.1} parent=27 // pred_region
          %v316 = vld [vmem:[#allocation2] sm:$0xff]
          %317 = vadd.xlane.f32.xlu0 %v316
          %v318 = vpop.xlane.xlu0 %317
          %v319 = vrot.slane %v318, 4
          %v320 = vadd.f32 %v318, %v319
          %v321 = vrot.slane %v320, 2
          %v322 = vadd.f32 %v320, %v321
          %v323 = vrot.slane %v322, 1
          %v324 = vadd.f32 %v322, %v323
          %s325 = vtos %v324
          %v326 = vstv %s325
          %vm327 = vcmask 0
          %328 = vst.msk [vmem:[%s237] sm:$0x1] %vm327, %v326
        $region52: #{tpu_custom_call.1} parent=27 // pred_fallthru
          _
        %p329 = scmp.lt.s32.totalorder %s23, 1
        %s330 = scalar_select %p329, %s23, 1
        %s331 = scalar_lea.vmem %s2, %s330
        // Predicated region
        $region53: #{tpu_custom_call.1} parent=27 // pred_check
          %p332 = pneg %p113
        $region54: #{tpu_custom_call.1} parent=27 // pred_check_branch
          %334 = sbr.rel (%p332) target = $region56
        $region55: #{tpu_custom_call.1} parent=27 // pred_region
          _
        $region56: #{tpu_custom_call.1} parent=27 // pred_fallthru
          _
      $region28: #{tpu_custom_call.1} parent=5 // pred_fallthru
        _
      %p335 = scmp.le.s32.totalorder 2, %s14
      // Predicated region
      $region57: #{tpu_custom_call.1} parent=5 // pred_check
        %p336 = pneg %p335
      $region58: #{tpu_custom_call.1} parent=5 // pred_check_branch
        %338 = sbr.rel (%p336) target = $region60
      $region59: #{tpu_custom_call.1} parent=5 // pred_region
        %s339 = ssub.s32 %s14, 2
        // Predicated region
        $region61: #{tpu_custom_call.1} parent=59 // pred_check
          %p340 = pneg %p119
        $region62: #{tpu_custom_call.1} parent=59 // pred_check_branch
          %342 = sbr.rel (%p340) target = $region64
        $region63: #{tpu_custom_call.1} parent=59 // pred_region
          %p343 = scmp.lt.s32.totalorder %s25, 1
          %s344 = scalar_select %p343, %s25, 1
          %s345 = scalar_lea.vmem %s2, %s344
        $region64: #{tpu_custom_call.1} parent=59 // pred_fallthru
          _
      $region60: #{tpu_custom_call.1} parent=5 // pred_fallthru
        _
    $region6: #{tpu_custom_call.1} parent=1 // loop_footer
      %s18 = sadd.s32 1, %s14
    $region7: #{tpu_custom_call.1} parent=1 // loop_footer_branch
      %13 = sbr.rel target = $region3
    $region8: #{tpu_custom_call.1} parent=1 // loop_exit
      _
    %346 = vsyncpa [#allocation4], 1
    %s347 = scalar_lea.sflag [#allocation4], 1
    %348 = vsyncpa %s347, 1
    %349 = vsyncpa [#allocation6], 1
    %s350 = scalar_lea.sflag [#allocation6], 1
    %351 = vsyncpa %s350, 1

</llo_original>
